<compile_context>
chip_gen: v6e
topology: v6e:2x2x1
jax: 0.10.0
libtpu: 0.0.40
codegen_flags: <defaults>
</compile_context>

<pallas_src>
from functools import partial

import jax
import jax.numpy as jnp
import numpy as np
from jax.experimental import pallas as pl
from jax.experimental.pallas import tpu as pltpu


def choose_dest_kernel(idx_ref, act_ref, w_ref, out_ref, *, N, H, G, P, C, Hd):
    D = G + 2 * H
    PHd = P * Hd
    PC = P * C
    W_out = out_ref.shape[1]
    gt = idx_ref[0]

    # ---- unpack the single activation slab (one input DMA) ----
    act = act_ref[...]                              # (N+2, max(H,G))
    dests = act[0:N, 0:H]                           # (N, H)
    src = act[N:N + 1, 0:H]                         # (1, H)
    gemb = act[N + 1:N + 2, 0:G]                    # (1, G)
    dest_hv = act_ref[pl.ds(gt, 1), :][:, 0:H]      # (1, H) ground-truth dest row

    # ---- static views into the single fused weight slab (one input DMA) ----
    rw1 = 0                       # FeatPredict layer-1 fused       (D, P*Hd)
    rw2 = D                       # FeatPredict layer-2 block-diag  (P*Hd, :)
    rb1 = D + PHd                 # layer-1 bias                    (1, P*Hd)
    rb2 = rb1 + 1                 # layer-2 bias                    (1, :)
    rwd = rb2 + 1                 # choose_dest weight, dests half  (1, H)
    rws = rwd + 1                 # choose_dest weight, src half    (1, H)
    rbc = rws + 1                 # choose_dest bias                (1, 1)
    w_d = w_ref[rwd:rwd + 1, 0:H]
    w_s = w_ref[rws:rws + 1, 0:H]
    bcd = w_ref[rbc:rbc + 1, 0:1]

    # ---- choose_dest scores, lane-major: one tiny MXU dot, contract on H ----
    scores = jax.lax.dot_general(
        w_d, dests, (((1,), (1,)), ((), ())),
        preferred_element_type=jnp.float32)                           # (1, N)
    const = jnp.sum(src * w_s, axis=1, keepdims=True) + bcd           # (1, 1)
    scores = scores + const

    m = jnp.max(scores, axis=1, keepdims=True)
    e = jnp.exp(scores - m)
    denom = jnp.sum(e, axis=1, keepdims=True)
    probs = e * pl.reciprocal(denom, approx=True)                     # (1, N)
    laneN = jax.lax.broadcasted_iota(jnp.int32, (1, N), 1)
    score_gt = jnp.sum(jnp.where(laneN == gt, scores, 0.0),
                       axis=1, keepdims=True)                         # (1, 1)
    logp_gt = (score_gt - m) - jnp.log(denom)                         # (1, 1)

    # ---- PredictFeatures: exactly two fused MXU dots ----
    e_input = jnp.concatenate([src, dest_hv, gemb], axis=1)           # (1, D)
    w1 = w_ref[rw1:rw1 + D, 0:PHd]
    b1 = w_ref[rb1:rb1 + 1, 0:PHd]
    h = jax.nn.sigmoid(
        jnp.dot(e_input, w1, preferred_element_type=jnp.float32) + b1)  # (1, P*Hd)
    w2 = w_ref[rw2:rw2 + PHd, :]                                      # (P*Hd, Wslab) block-diag, zero padded
    b2 = w_ref[rb2:rb2 + 1, :]                                        # (1, Wslab)
    logits_full = (jnp.dot(h, w2, preferred_element_type=jnp.float32)
                   + b2)                                              # (1, Wslab); lanes >= PC are 0

    # ---- per-predictor argmax / log-softmax on the flat lane layout ----
    lane = jax.lax.broadcasted_iota(jnp.int32, logits_full.shape, 1)
    u2v_cols = []
    loss = jnp.zeros((1, 1), jnp.float32)
    for p in range(P):                               # static, P is tiny
        seg = (lane >= p * C) & (lane < (p + 1) * C)
        m_p = jnp.max(jnp.where(seg, logits_full, -jnp.inf),
                      axis=1, keepdims=True)                          # (1, 1)
        # mask BEFORE the exp so out-of-segment lanes never see a large argument
        d_p = jnp.sum(jnp.exp(jnp.where(seg, logits_full - m_p, -1e30)),
                      axis=1, keepdims=True)                          # (1, 1)
        # first-max argmax within this segment (matches jnp/torch argmax)
        idx_p = jnp.min(jnp.where(seg & (logits_full == m_p), lane - p * C, C),
                        axis=1, keepdims=True)                        # (1, 1) int32
        u2v_cols.append(idx_p)
        tc = idx_ref[1 + p]
        val_tc = jnp.sum(jnp.where(lane == p * C + tc, logits_full, 0.0),
                         axis=1, keepdims=True)
        loss = loss + (val_tc - m_p) - jnp.log(d_p)

    u2v = jnp.concatenate(u2v_cols, axis=1)                           # (1, P) int32
    laneP = jax.lax.broadcasted_iota(jnp.int32, (1, P), 1)
    # TODO(synk): module hard-codes pred[0][1] = (pred[0][1] + 4) % 8; kept as-is.
    v2u = jnp.where(laneP == 1, (u2v + 4) % 8, u2v)                   # (1, P) int32

    # ---- single lane-dense 128-wide output store (one output DMA) ----
    used = N + 2 + PC + 2 * P
    out_ref[...] = jnp.concatenate(
        [probs, logp_gt, loss, logits_full[:, 0:PC],
         u2v.astype(jnp.float32), v2u.astype(jnp.float32),
         jnp.zeros((1, W_out - used), jnp.float32)], axis=1)


def pack_params(params):
    """Host-side (one-time) fusion of every static operand into ONE VMEM slab."""
    P, H, Hd = params["w1s"].shape
    G = params["w1g"].shape[1]
    C = params["b2"].shape[1]
    D = G + 2 * H
    PHd, PC = P * Hd, P * C
    W = max(D, PHd, PC, H)
    rows = D + PHd + 5
    rows_pad = ((rows + 7) // 8) * 8
    slab = np.zeros((rows_pad, W), np.float32)
    for p in range(P):
        # layer 1: columns p*Hd:(p+1)*Hd hold concat([w1s, w1d, w1g])[p]
        w1p = np.concatenate([np.asarray(params["w1s"][p]),
                              np.asarray(params["w1d"][p]),
                              np.asarray(params["w1g"][p])], axis=0)       # (D, Hd)
        slab[0:D, p * Hd:(p + 1) * Hd] = w1p
        # layer 2: block-diagonal so one dot produces all predictors
        slab[D + p * Hd:D + (p + 1) * Hd, p * C:(p + 1) * C] = np.asarray(params["w2"][p])
    slab[D + PHd, 0:PHd] = np.asarray(params["b1"]).reshape(-1)
    slab[D + PHd + 1, 0:PC] = np.asarray(params["b2"]).reshape(-1)
    slab[D + PHd + 2, 0:H] = np.asarray(params["w_d"]).reshape(-1)         # dests half
    slab[D + PHd + 3, 0:H] = np.asarray(params["w_s"]).reshape(-1)         # src half
    slab[D + PHd + 4, 0] = float(np.asarray(params["b_cd"]).reshape(()))
    return dict(wslab=jnp.asarray(slab), P=P, C=C, Hd=Hd, H=H, G=G)


def choose_dest_and_update(packed, dests, src, gemb, gt_idx, true_classes):
    N, H = dests.shape
    G = gemb.shape[1]
    P, C, Hd = packed["P"], packed["C"], packed["Hd"]
    PC = P * C
    W_out = 128
    assert N + 2 + PC + 2 * P <= W_out

    # Single activation slab (layout plumbing; the upstream embed/prop pass
    # would ideally emit this directly): rows 0..N-1 = dests, N = src, N+1 = g-embed.
    Wact = max(H, G)
    act = jnp.concatenate(
        [jnp.pad(dests, ((0, 0), (0, Wact - H))),
         jnp.pad(src, ((0, 0), (0, Wact - H))),
         jnp.pad(gemb, ((0, 0), (0, Wact - G)))], axis=0)                  # (N+2, Wact)

    idx = jnp.concatenate([gt_idx.astype(jnp.int32),
                           true_classes.astype(jnp.int32)])               # (1+P,)

    smem = pl.BlockSpec(memory_space=pltpu.MemorySpace.SMEM)
    vmem = pl.BlockSpec(memory_space=pltpu.MemorySpace.VMEM)
    fn = pl.pallas_call(
        partial(choose_dest_kernel, N=N, H=H, G=G, P=P, C=C, Hd=Hd),
        out_shape=jax.ShapeDtypeStruct((1, W_out), jnp.float32),
        in_specs=[smem, vmem, vmem],
        out_specs=vmem,
    )
    row = fn(idx, act, packed["wslab"])                                    # (1, 128)

    o_lp = N
    o_loss = N + 1
    o_lg = N + 2
    o_u2v = o_lg + PC
    o_v2u = o_u2v + P
    return {
        "dests_probs": row[:, 0:N],                                        # (1, N)
        "log_prob_gt": row[:, o_lp:o_lp + 1],                              # (1, 1)
        "feature_logits": row[:, o_lg:o_lg + PC].reshape(P, C),            # (P, C)
        "pred_edge_features_u2v": row[:, o_u2v:o_u2v + P].astype(jnp.int32),   # (1, P)
        "pred_edge_features_v2u": row[:, o_v2u:o_v2u + P].astype(jnp.int32),   # (1, P)
        "feature_loss": row[:, o_loss:o_loss + 1],                         # (1, 1)
    }


def reference(params, dests, src, gemb, gt_idx, true_classes):
    """Pure-JAX reference mirroring the PyTorch semantics (training branch)."""
    N, H = dests.shape
    scores_col = (jnp.dot(dests, params["w_d"], precision="highest")
                  + jnp.dot(src, params["w_s"], precision="highest")
                  + params["b_cd"])                                        # (N, 1)
    scores_row = scores_col.reshape(1, -1)
    probs = jax.nn.softmax(scores_row, axis=1)
    logsm = jax.nn.log_softmax(scores_row, axis=1)
    gt = int(gt_idx[0])
    logp_gt = logsm[:, gt:gt + 1]
    dest_hv = dests[gt:gt + 1]
    e_input = jnp.concatenate([src, dest_hv, gemb], axis=1)
    rows = []
    for p in range(params["w2"].shape[0]):
        W1p = jnp.concatenate(
            [params["w1s"][p], params["w1d"][p], params["w1g"][p]], axis=0)
        h = jax.nn.sigmoid(e_input @ W1p + params["b1"][p:p + 1])
        rows.append(h @ params["w2"][p] + params["b2"][p:p + 1])
    logits = jnp.concatenate(rows, axis=0)
    u2v = jnp.argmax(logits, axis=1).astype(jnp.int32).reshape(1, -1)
    v2u = u2v.at[0, 1].set((u2v[0, 1] + 4) % 8)
    lsm = jax.nn.log_softmax(logits, axis=1)
    loss = lsm[jnp.arange(logits.shape[0]), true_classes].sum().reshape(1, 1)
    return probs, logp_gt, logits, u2v, v2u, loss


if __name__ == "__main__":
    # Small shapes consistent with the module.
    N = 8           # g.num_nodes() - 1 possible destinations
    H = 16          # node_hidden_size
    G = 32          # graph_embed_func.graph_hidden_size
    D = G + 2 * H   # FeatPredict input dim
    Hd = D // 2     # FeatPredict hidden dim
    C = 9           # num_edge_feature_classes (torch.cat(dim=0) requires equal C)
    P = 2           # len(num_edge_feature_classes_list)

    key = jax.random.PRNGKey(0)
    ks = jax.random.split(key, 12)

    dests = jax.random.normal(ks[0], (N, H), jnp.float32)
    src = jax.random.normal(ks[1], (1, H), jnp.float32)
    gemb = jax.random.normal(ks[2], (1, G), jnp.float32)

    params = {
        # choose_dest Linear(2H, 1): weight.T split into dests / src halves.
        "w_d": 0.2 * jax.random.normal(ks[3], (H, 1), jnp.float32),
        "w_s": 0.2 * jax.random.normal(ks[4], (H, 1), jnp.float32),
        "b_cd": 0.1 * jax.random.normal(ks[5], (1, 1), jnp.float32),
        # FeatPredict layer 1 (stacked over predictors), split along e_input cat:
        "w1s": 0.2 * jax.random.normal(ks[6], (P, H, Hd), jnp.float32),
        "w1d": 0.2 * jax.random.normal(ks[7], (P, H, Hd), jnp.float32),
        "w1g": 0.2 * jax.random.normal(ks[8], (P, G, Hd), jnp.float32),
        "b1": 0.1 * jax.random.normal(ks[9], (P, Hd), jnp.float32),
        # FeatPredict layer 2 (stacked over predictors):
        "w2": 0.2 * jax.random.normal(ks[10], (P, Hd, C), jnp.float32),
        "b2": 0.1 * jax.random.normal(ks[11], (P, C), jnp.float32),
    }

    gt_idx = jnp.array([3], dtype=jnp.int32)            # reference_list index of dest
    true_classes = jnp.array([2, 5], dtype=jnp.int32)   # action[1] flattened

    packed = pack_params(params)
    out = choose_dest_and_update(packed, dests, src, gemb, gt_idx, true_classes)
    out = jax.block_until_ready(out)

    r_probs, r_logp, r_logits, r_u2v, r_v2u, r_loss = reference(
        params, dests, src, gemb, gt_idx, true_classes)

    np.testing.assert_allclose(out["dests_probs"], r_probs, rtol=1e-3, atol=1e-4)
    np.testing.assert_allclose(out["log_prob_gt"], r_logp, rtol=1e-3, atol=1e-4)
    np.testing.assert_allclose(out["feature_logits"], r_logits, rtol=1e-3, atol=1e-4)
    np.testing.assert_array_equal(np.asarray(out["pred_edge_features_u2v"]),
                                  np.asarray(r_u2v))
    np.testing.assert_array_equal(np.asarray(out["pred_edge_features_v2u"]),
                                  np.asarray(r_v2u))
    np.testing.assert_allclose(out["feature_loss"], r_loss, rtol=1e-3, atol=1e-4)

    print("KERNEL_OK")
</pallas_src>

<mosaic_0001>
module attributes {stable_mosaic.version = 11 : i64} {
  func.func @choose_dest_kernel(%arg0: memref<3xi32, #tpu.memory_space<smem>>, %arg1: memref<10x32xf32, #tpu.memory_space<vmem>>, %arg2: memref<136x64xf32, #tpu.memory_space<vmem>>, %arg3: memref<1x128xf32, #tpu.memory_space<vmem>>) attributes {dimension_semantics = [], scalar_prefetch = 0 : i64, scratch_operands = 0 : i64, tpu.core_type = #tpu.core_type<tc>} {
    %c0 = arith.constant 0 : index
    %0 = memref.load %arg0[%c0] : memref<3xi32, #tpu.memory_space<smem>>
    %c0_0 = arith.constant 0 : index
    %c0_1 = arith.constant 0 : index
    %1 = vector.load %arg1[%c0_0, %c0_1] : memref<10x32xf32, #tpu.memory_space<vmem>>, vector<10x32xf32>
    %2 = vector.extract_strided_slice %1 {offsets = [0, 0], sizes = [8, 16], strides = [1, 1]} : vector<10x32xf32> to vector<8x16xf32>
    %3 = vector.extract_strided_slice %1 {offsets = [8, 0], sizes = [1, 16], strides = [1, 1]} : vector<10x32xf32> to vector<1x16xf32>
    %4 = vector.extract_strided_slice %1 {offsets = [9, 0], sizes = [1, 32], strides = [1, 1]} : vector<10x32xf32> to vector<1x32xf32>
    %5 = arith.index_cast %0 : i32 to index
    %c0_2 = arith.constant 0 : index
    %6 = vector.load %arg1[%5, %c0_2] : memref<10x32xf32, #tpu.memory_space<vmem>>, vector<1x32xf32>
    %7 = vector.extract_strided_slice %6 {offsets = [0, 0], sizes = [1, 16], strides = [1, 1]} : vector<1x32xf32> to vector<1x16xf32>
    %c130 = arith.constant 130 : index
    %c0_3 = arith.constant 0 : index
    %8 = vector.load %arg2[%c130, %c0_3] : memref<136x64xf32, #tpu.memory_space<vmem>>, vector<1x16xf32>
    %c131 = arith.constant 131 : index
    %c0_4 = arith.constant 0 : index
    %9 = vector.load %arg2[%c131, %c0_4] : memref<136x64xf32, #tpu.memory_space<vmem>>, vector<1x16xf32>
    %c132 = arith.constant 132 : index
    %c0_5 = arith.constant 0 : index
    %10 = vector.load %arg2[%c132, %c0_5] : memref<136x64xf32, #tpu.memory_space<vmem>>, vector<1x1xf32>
    %cst = arith.constant dense<0.000000e+00> : vector<1x8xf32>
    %11 = tpu.matmul %8, %2, %cst {dimension_numbers = #tpu.dot_dimension_numbers<[1], [1], [0], [0], [0, 0, 1, 0], [], []>} : vector<1x16xf32>, vector<8x16xf32>, vector<1x8xf32> -> vector<1x8xf32>
    %12 = arith.mulf %3, %9 : vector<1x16xf32>
    %cst_6 = arith.constant dense<0.000000e+00> : vector<1xf32>
    %13 = vector.multi_reduction <add>, %12, %cst_6 [1] : vector<1x16xf32> to vector<1xf32>
    %14 = vector.shape_cast %13 : vector<1xf32> to vector<1x1xf32>
    %15 = arith.addf %14, %10 : vector<1x1xf32>
    %16 = vector.broadcast %15 : vector<1x1xf32> to vector<1x8xf32>
    %17 = arith.addf %11, %16 : vector<1x8xf32>
    %cst_7 = arith.constant dense<0xFF800000> : vector<1xf32>
    %18 = vector.multi_reduction <maximumf>, %17, %cst_7 [1] : vector<1x8xf32> to vector<1xf32>
    %19 = vector.shape_cast %18 : vector<1xf32> to vector<1x1xf32>
    %20 = vector.broadcast %19 : vector<1x1xf32> to vector<1x8xf32>
    %21 = arith.subf %17, %20 : vector<1x8xf32>
    %22 = math.exp %21 : vector<1x8xf32>
    %cst_8 = arith.constant dense<0.000000e+00> : vector<1xf32>
    %23 = vector.multi_reduction <add>, %22, %cst_8 [1] : vector<1x8xf32> to vector<1xf32>
    %24 = vector.shape_cast %23 : vector<1xf32> to vector<1x1xf32>
    %25 = tpu.reciprocal %24 {approx = true} : vector<1x1xf32> -> vector<1x1xf32>
    %26 = vector.broadcast %25 : vector<1x1xf32> to vector<1x8xf32>
    %27 = arith.mulf %22, %26 : vector<1x8xf32>
    %28 = tpu.iota {dimensions = array<i32: 1>} : vector<1x8xi32>
    %29 = vector.broadcast %0 : i32 to vector<1x8xi32>
    %30 = arith.cmpi eq, %28, %29 : vector<1x8xi32>
    %cst_9 = arith.constant 0.000000e+00 : f32
    %31 = vector.broadcast %cst_9 : f32 to vector<1x8xf32>
    %32 = arith.select %30, %17, %31 : vector<1x8xi1>, vector<1x8xf32>
    %cst_10 = arith.constant dense<0.000000e+00> : vector<1xf32>
    %33 = vector.multi_reduction <add>, %32, %cst_10 [1] : vector<1x8xf32> to vector<1xf32>
    %34 = vector.shape_cast %33 : vector<1xf32> to vector<1x1xf32>
    %35 = arith.subf %34, %19 : vector<1x1xf32>
    %36 = math.log %24 : vector<1x1xf32>
    %37 = arith.subf %35, %36 : vector<1x1xf32>
    %38 = tpu.concatenate %3, %7, %4 in 1 : vector<1x16xf32>, vector<1x16xf32>, vector<1x32xf32> -> vector<1x64xf32>
    %c0_11 = arith.constant 0 : index
    %c0_12 = arith.constant 0 : index
    %39 = vector.load %arg2[%c0_11, %c0_12] : memref<136x64xf32, #tpu.memory_space<vmem>>, vector<64x64xf32>
    %c128 = arith.constant 128 : index
    %c0_13 = arith.constant 0 : index
    %40 = vector.load %arg2[%c128, %c0_13] : memref<136x64xf32, #tpu.memory_space<vmem>>, vector<1x64xf32>
    %cst_14 = arith.constant dense<0.000000e+00> : vector<1x64xf32>
    %41 = tpu.matmul %38, %39, %cst_14 {dimension_numbers = #tpu.dot_dimension_numbers<[1], [0], [0], [1], [0, 0, 1, 1], [], []>} : vector<1x64xf32>, vector<64x64xf32>, vector<1x64xf32> -> vector<1x64xf32>
    %42 = arith.addf %41, %40 : vector<1x64xf32>
    %43 = arith.negf %42 : vector<1x64xf32>
    %44 = math.exp %43 : vector<1x64xf32>
    %cst_15 = arith.constant 1.000000e+00 : f32
    %45 = vector.broadcast %cst_15 : f32 to vector<1x64xf32>
    %46 = arith.addf %45, %44 : vector<1x64xf32>
    %47 = arith.divf %45, %46 : vector<1x64xf32>
    %c64 = arith.constant 64 : index
    %c0_16 = arith.constant 0 : index
    %48 = vector.load %arg2[%c64, %c0_16] : memref<136x64xf32, #tpu.memory_space<vmem>>, vector<64x64xf32>
    %c129 = arith.constant 129 : index
    %c0_17 = arith.constant 0 : index
    %49 = vector.load %arg2[%c129, %c0_17] : memref<136x64xf32, #tpu.memory_space<vmem>>, vector<1x64xf32>
    %cst_18 = arith.constant dense<0.000000e+00> : vector<1x64xf32>
    %50 = tpu.matmul %47, %48, %cst_18 {dimension_numbers = #tpu.dot_dimension_numbers<[1], [0], [0], [1], [0, 0, 1, 1], [], []>} : vector<1x64xf32>, vector<64x64xf32>, vector<1x64xf32> -> vector<1x64xf32>
    %51 = arith.addf %50, %49 : vector<1x64xf32>
    %52 = tpu.iota {dimensions = array<i32: 1>} : vector<1x64xi32>
    %cst_19 = arith.constant 0.000000e+00 : f32
    %53 = vector.broadcast %cst_19 : f32 to vector<1x1xf32>
    %c0_i32 = arith.constant 0 : i32
    %54 = vector.broadcast %c0_i32 : i32 to vector<1x64xi32>
    %55 = arith.cmpi sge, %52, %54 : vector<1x64xi32>
    %c9_i32 = arith.constant 9 : i32
    %56 = vector.broadcast %c9_i32 : i32 to vector<1x64xi32>
    %57 = arith.cmpi slt, %52, %56 : vector<1x64xi32>
    %58 = arith.andi %55, %57 : vector<1x64xi1>
    %cst_20 = arith.constant 0xFF800000 : f32
    %59 = vector.broadcast %cst_20 : f32 to vector<1x64xf32>
    %60 = arith.select %58, %51, %59 : vector<1x64xi1>, vector<1x64xf32>
    %cst_21 = arith.constant dense<0xFF800000> : vector<1xf32>
    %61 = vector.multi_reduction <maximumf>, %60, %cst_21 [1] : vector<1x64xf32> to vector<1xf32>
    %62 = vector.shape_cast %61 : vector<1xf32> to vector<1x1xf32>
    %63 = vector.broadcast %62 : vector<1x1xf32> to vector<1x64xf32>
    %64 = arith.subf %51, %63 : vector<1x64xf32>
    %cst_22 = arith.constant -1.000000e+30 : f32
    %65 = vector.broadcast %cst_22 : f32 to vector<1x64xf32>
    %66 = arith.select %58, %64, %65 : vector<1x64xi1>, vector<1x64xf32>
    %67 = math.exp %66 : vector<1x64xf32>
    %cst_23 = arith.constant dense<0.000000e+00> : vector<1xf32>
    %68 = vector.multi_reduction <add>, %67, %cst_23 [1] : vector<1x64xf32> to vector<1xf32>
    %69 = vector.shape_cast %68 : vector<1xf32> to vector<1x1xf32>
    %70 = vector.broadcast %62 : vector<1x1xf32> to vector<1x64xf32>
    %71 = arith.cmpf oeq, %51, %70 : vector<1x64xf32>
    %72 = arith.andi %58, %71 : vector<1x64xi1>
    %c0_i32_24 = arith.constant 0 : i32
    %73 = vector.broadcast %c0_i32_24 : i32 to vector<1x64xi32>
    %74 = arith.subi %52, %73 : vector<1x64xi32>
    %c9_i32_25 = arith.constant 9 : i32
    %75 = vector.broadcast %c9_i32_25 : i32 to vector<1x64xi32>
    %76 = arith.select %72, %74, %75 : vector<1x64xi1>, vector<1x64xi32>
    %cst_26 = arith.constant dense<2147483647> : vector<1xi32>
    %77 = vector.multi_reduction <minsi>, %76, %cst_26 [1] : vector<1x64xi32> to vector<1xi32>
    %78 = vector.shape_cast %77 : vector<1xi32> to vector<1x1xi32>
    %c1 = arith.constant 1 : index
    %79 = memref.load %arg0[%c1] : memref<3xi32, #tpu.memory_space<smem>>
    %c0_i32_27 = arith.constant 0 : i32
    %80 = arith.addi %c0_i32_27, %79 : i32
    %81 = vector.broadcast %80 : i32 to vector<1x64xi32>
    %82 = arith.cmpi eq, %52, %81 : vector<1x64xi32>
    %cst_28 = arith.constant 0.000000e+00 : f32
    %83 = vector.broadcast %cst_28 : f32 to vector<1x64xf32>
    %84 = arith.select %82, %51, %83 : vector<1x64xi1>, vector<1x64xf32>
    %cst_29 = arith.constant dense<0.000000e+00> : vector<1xf32>
    %85 = vector.multi_reduction <add>, %84, %cst_29 [1] : vector<1x64xf32> to vector<1xf32>
    %86 = vector.shape_cast %85 : vector<1xf32> to vector<1x1xf32>
    %87 = arith.subf %86, %62 : vector<1x1xf32>
    %88 = arith.addf %53, %87 : vector<1x1xf32>
    %89 = math.log %69 : vector<1x1xf32>
    %90 = arith.subf %88, %89 : vector<1x1xf32>
    %c9_i32_30 = arith.constant 9 : i32
    %91 = vector.broadcast %c9_i32_30 : i32 to vector<1x64xi32>
    %92 = arith.cmpi sge, %52, %91 : vector<1x64xi32>
    %c18_i32 = arith.constant 18 : i32
    %93 = vector.broadcast %c18_i32 : i32 to vector<1x64xi32>
    %94 = arith.cmpi slt, %52, %93 : vector<1x64xi32>
    %95 = arith.andi %92, %94 : vector<1x64xi1>
    %cst_31 = arith.constant 0xFF800000 : f32
    %96 = vector.broadcast %cst_31 : f32 to vector<1x64xf32>
    %97 = arith.select %95, %51, %96 : vector<1x64xi1>, vector<1x64xf32>
    %cst_32 = arith.constant dense<0xFF800000> : vector<1xf32>
    %98 = vector.multi_reduction <maximumf>, %97, %cst_32 [1] : vector<1x64xf32> to vector<1xf32>
    %99 = vector.shape_cast %98 : vector<1xf32> to vector<1x1xf32>
    %100 = vector.broadcast %99 : vector<1x1xf32> to vector<1x64xf32>
    %101 = arith.subf %51, %100 : vector<1x64xf32>
    %cst_33 = arith.constant -1.000000e+30 : f32
    %102 = vector.broadcast %cst_33 : f32 to vector<1x64xf32>
    %103 = arith.select %95, %101, %102 : vector<1x64xi1>, vector<1x64xf32>
    %104 = math.exp %103 : vector<1x64xf32>
    %cst_34 = arith.constant dense<0.000000e+00> : vector<1xf32>
    %105 = vector.multi_reduction <add>, %104, %cst_34 [1] : vector<1x64xf32> to vector<1xf32>
    %106 = vector.shape_cast %105 : vector<1xf32> to vector<1x1xf32>
    %107 = vector.broadcast %99 : vector<1x1xf32> to vector<1x64xf32>
    %108 = arith.cmpf oeq, %51, %107 : vector<1x64xf32>
    %109 = arith.andi %95, %108 : vector<1x64xi1>
    %c9_i32_35 = arith.constant 9 : i32
    %110 = vector.broadcast %c9_i32_35 : i32 to vector<1x64xi32>
    %111 = arith.subi %52, %110 : vector<1x64xi32>
    %c9_i32_36 = arith.constant 9 : i32
    %112 = vector.broadcast %c9_i32_36 : i32 to vector<1x64xi32>
    %113 = arith.select %109, %111, %112 : vector<1x64xi1>, vector<1x64xi32>
    %cst_37 = arith.constant dense<2147483647> : vector<1xi32>
    %114 = vector.multi_reduction <minsi>, %113, %cst_37 [1] : vector<1x64xi32> to vector<1xi32>
    %115 = vector.shape_cast %114 : vector<1xi32> to vector<1x1xi32>
    %c2 = arith.constant 2 : index
    %116 = memref.load %arg0[%c2] : memref<3xi32, #tpu.memory_space<smem>>
    %c9_i32_38 = arith.constant 9 : i32
    %117 = arith.addi %c9_i32_38, %116 : i32
    %118 = vector.broadcast %117 : i32 to vector<1x64xi32>
    %119 = arith.cmpi eq, %52, %118 : vector<1x64xi32>
    %cst_39 = arith.constant 0.000000e+00 : f32
    %120 = vector.broadcast %cst_39 : f32 to vector<1x64xf32>
    %121 = arith.select %119, %51, %120 : vector<1x64xi1>, vector<1x64xf32>
    %cst_40 = arith.constant dense<0.000000e+00> : vector<1xf32>
    %122 = vector.multi_reduction <add>, %121, %cst_40 [1] : vector<1x64xf32> to vector<1xf32>
    %123 = vector.shape_cast %122 : vector<1xf32> to vector<1x1xf32>
    %124 = arith.subf %123, %99 : vector<1x1xf32>
    %125 = arith.addf %90, %124 : vector<1x1xf32>
    %126 = math.log %106 : vector<1x1xf32>
    %127 = arith.subf %125, %126 : vector<1x1xf32>
    %128 = tpu.concatenate %78, %115 in 1 : vector<1x1xi32>, vector<1x1xi32> -> vector<1x2xi32>
    %129 = tpu.iota {dimensions = array<i32: 1>} : vector<1x2xi32>
    %c1_i32 = arith.constant 1 : i32
    %130 = vector.broadcast %c1_i32 : i32 to vector<1x2xi32>
    %131 = arith.cmpi eq, %129, %130 : vector<1x2xi32>
    %c4_i32 = arith.constant 4 : i32
    %132 = vector.broadcast %c4_i32 : i32 to vector<1x2xi32>
    %133 = arith.addi %128, %132 : vector<1x2xi32>
    %c8_i32 = arith.constant 8 : i32
    %c0_i32_41 = arith.constant 0 : i32
    %134 = arith.cmpi eq, %c8_i32, %c0_i32_41 : i32
    %c1_i32_42 = arith.constant 1 : i32
    %135 = arith.select %134, %c1_i32_42, %c8_i32 : i32
    %136 = vector.broadcast %135 : i32 to vector<1x2xi32>
    %137 = arith.remsi %133, %136 : vector<1x2xi32>
    %c0_i32_43 = arith.constant 0 : i32
    %138 = vector.broadcast %c0_i32_43 : i32 to vector<1x2xi32>
    %139 = arith.cmpi ne, %137, %138 : vector<1x2xi32>
    %c0_i32_44 = arith.constant 0 : i32
    %140 = vector.broadcast %c0_i32_44 : i32 to vector<1x2xi32>
    %141 = arith.cmpi slt, %137, %140 : vector<1x2xi32>
    %c0_i32_45 = arith.constant 0 : i32
    %142 = arith.cmpi slt, %135, %c0_i32_45 : i32
    %143 = vector.broadcast %142 : i1 to vector<1x2xi1>
    %144 = vector.broadcast %143 : vector<1x2xi1> to vector<1x2xi1>
    %145 = arith.xori %141, %144 : vector<1x2xi1>
    %146 = arith.andi %145, %139 : vector<1x2xi1>
    %147 = vector.broadcast %135 : i32 to vector<1x2xi32>
    %148 = arith.addi %137, %147 : vector<1x2xi32>
    %149 = arith.select %146, %148, %137 : vector<1x2xi1>, vector<1x2xi32>
    %150 = arith.select %131, %149, %128 : vector<1x2xi1>, vector<1x2xi32>
    %151 = vector.extract_strided_slice %51 {offsets = [0, 0], sizes = [1, 18], strides = [1, 1]} : vector<1x64xf32> to vector<1x18xf32>
    %152 = arith.sitofp %128 : vector<1x2xi32> to vector<1x2xf32>
    %153 = arith.sitofp %150 : vector<1x2xi32> to vector<1x2xf32>
    %cst_46 = arith.constant 0.000000e+00 : f32
    %154 = vector.broadcast %cst_46 : f32 to vector<1x96xf32>
    %155 = tpu.concatenate %27, %37, %127, %151, %152, %153, %154 in 1 : vector<1x8xf32>, vector<1x1xf32>, vector<1x1xf32>, vector<1x18xf32>, vector<1x2xf32>, vector<1x2xf32>, vector<1x96xf32> -> vector<1x128xf32>
    %c0_47 = arith.constant 0 : index
    %c0_48 = arith.constant 0 : index
    %156 = vector.load %arg3[%c0_47, %c0_48] : memref<1x128xf32, #tpu.memory_space<vmem>>, vector<1x128xf32>
    tpu.vector_store %arg3[%c0_47, %c0_48], %155 {strides = array<i32>} : memref<1x128xf32, #tpu.memory_space<vmem>>, vector<1x128xf32>,
    return
  }
}

</mosaic_0001>

<llo_original>
// kernel: tpu_custom_call.1
$region0: #{tpu_custom_call.1}
  #allocation0 [shape = 'u32[]', space=smem, size = 0x4, offset = 0x4, fixed_abs, tag = 'smem constant byte address 0x4 - core index']
  #allocation1 [shape = 'u32[144,128]{1,0:T(1,128)}', space=vmem, size = 0x12000, scoped, tag = 'internal scratch']
  %s0 = inlined_call_operand.vmem [shape: s32[3], index: 0, kind: input, shape index: {}]
  %s1 = inlined_call_operand.vmem [shape: f32[10,32], index: 1, kind: input, shape index: {}]
  %s2 = inlined_call_operand.vmem [shape: f32[136,64], index: 2, kind: input, shape index: {}]
  %s3 = inlined_call_operand.hbm [shape: f32[1,128], index: 3, kind: output, shape index: {}]
  %s4 = sld [smem:[#allocation0]]
  $region26: #{tpu_custom_call.1} parent=0
    _
  %s6 = ssub.s32 1, %s4
  %s7 = scalar_select 0, %s6, %s4
  $region1: #{tpu_custom_call.1} parent=0
    #allocation2 [shape = 'u8[512]{0}', space=smem, size = 0x200, scoped, tag = 'input window, operand 0, single buffered']
    #allocation3 [shape = 's32[1]{0}', space=sflag, size = 0x4, scoped, tag = 'scoped memory for tpu_custom_call.1']
    #allocation4 [shape = 's32[1]{0}', space=sflag, size = 0x4, scoped, tag = 'scoped memory for tpu_custom_call.1']
    #allocation5 [shape = 'u8[512]{0}', space=vmem, size = 0x400, scoped, tag = 'output window, operand 0, single buffered']
    %8 = vsyncpa [#allocation4], 0
    %9 = vsyncpa [#allocation3], 0
    // Predicated region
    $region2: #{tpu_custom_call.1} parent=1 // pred_check
      _
    $region3: #{tpu_custom_call.1} parent=1 // pred_check_branch
      %11 = sbr.rel (0) target = $region5
    $region4: #{tpu_custom_call.1} parent=1 // pred_region
      %s13 = ssub.s32 16, 16
      %14 = vsyncadd [#allocation4], %s13
      %s16 = sshll.u32 %s0, 4
      %s17 = int_to_ptr.vmem [resolvable:$true] %s16
      %19 = dma.vmem_to_smem %s17, 16, [#allocation2], [#allocation4]
    $region5: #{tpu_custom_call.1} parent=1 // pred_fallthru
      _
    // Predicated region
    $region6: #{tpu_custom_call.1} parent=1 // pred_check
      _
    $region7: #{tpu_custom_call.1} parent=1 // pred_check_branch
      %21 = sbr.rel (0) target = $region9
    $region8: #{tpu_custom_call.1} parent=1 // pred_region
      _
    $region9: #{tpu_custom_call.1} parent=1 // pred_fallthru
      _
    // Predicated region
    $region10: #{tpu_custom_call.1} parent=1 // pred_check
      _
    $region11: #{tpu_custom_call.1} parent=1 // pred_check_branch
      %23 = sbr.rel (0) target = $region13
    $region12: #{tpu_custom_call.1} parent=1 // pred_region
      _
    $region13: #{tpu_custom_call.1} parent=1 // pred_fallthru
      _
    // Predicated region
    $region14: #{tpu_custom_call.1} parent=1 // pred_check
      _
    $region15: #{tpu_custom_call.1} parent=1 // pred_check_branch
      %25 = sbr.rel (0) target = $region17
    $region16: #{tpu_custom_call.1} parent=1 // pred_region
      %26 = dma.done [#allocation4], 16
    $region17: #{tpu_custom_call.1} parent=1 // pred_fallthru
      _
    %27 = sfence
    %s28 = sld [smem:[#allocation2]]
    %v29 = vld [vmem:[%s1] sm:$0xff]
    %v30 = vld [vmem:[%s1 + $0x8] sm:$0x3]
    %s31 = scalar_lea.vmem %s1, %s28
    %v32 = vld [vmem:[%s31] sm:$0x1]
    %v33 = vld [vmem:[%s2 + $0x82] sm:$0x1]
    %v34 = vld [vmem:[%s2 + $0x83] sm:$0x1]
    %v35 = vld [vmem:[%s2 + $0x84] sm:$0x1]
    %v36 = vmul.f32 %v30, %v34
    %vm37 = vcmask 122880
    %v38 = vsel %vm37, %v36, 0.0
    %39 = vadd.xlane.f32.xlu0 %v38
    %v40 = vpop.xlane.xlu0 %39
    %v41 = vadd.f32 %v40, %v35
    %43 = vset.pattern.permute.xlu0 0
    %44 = vperm.xlu0 %43, %v41
    %v45 = vpop.permute.xlu0 %44
    %vm47 = vcmask 130048
    %v49 = vsel %vm47, %v33, 0
    %v52 = vsel %vm47, %v29, 0
    %54 = vmatprep.subr.mxu0 0.0
    %55 = vmatpush1.xpose.msra.mxu0 0.0
    %56 = vmatprep.subr.mxu0 0.0
    %57 = vmatpush1.xpose.msra.mxu0 0.0
    %58 = vmatprep.subr.mxu0 0.0
    %59 = vmatpush1.xpose.msra.mxu0 0.0
    %60 = vmatprep.subr.mxu0 0.0
    %61 = vmatpush1.xpose.msra.mxu0 0.0
    %62 = vmatprep.subr.mxu0 0.0
    %63 = vmatpush1.xpose.msra.mxu0 0.0
    %64 = vmatprep.subr.mxu0 0.0
    %65 = vmatpush1.xpose.msra.mxu0 0.0
    %66 = vmatprep.subr.mxu0 0.0
    %67 = vmatpush1.xpose.msra.mxu0 0.0
    %68 = vmatprep.subr.mxu0 0.0
    %69 = vmatpush1.xpose.msra.mxu0 0.0
    %70 = vmatprep.subr.mxu0 0.0
    %71 = vmatpush1.xpose.msra.mxu0 0.0
    %72 = vmatprep.subr.mxu0 0.0
    %73 = vmatpush1.xpose.msra.mxu0 0.0
    %74 = vmatprep.subr.mxu0 0.0
    %75 = vmatpush1.xpose.msra.mxu0 0.0
    %76 = vmatprep.subr.mxu0 0.0
    %77 = vmatpush1.xpose.msra.mxu0 0.0
    %78 = vmatprep.subr.mxu0 0.0
    %79 = vmatpush1.xpose.msra.mxu0 0.0
    %80 = vmatprep.subr.mxu0 0.0
    %81 = vmatpush1.xpose.msra.mxu0 0.0
    %82 = vmatprep.subr.mxu0 0.0
    %83 = vmatpush1.xpose.msra.mxu0 0.0
    %84 = vmatprep.subr.mxu0 0.0
    %85 = vmatpush1.xpose.msra.mxu0 %v52
    %86 = vmatprep.subr.mxu0 0.0
    %87 = vmatpush2.xpose.msra.mxu0 0.0
    %88 = vmatprep.subr.mxu0 0.0
    %89 = vmatpush2.xpose.msra.mxu0 0.0
    %90 = vmatprep.subr.mxu0 0.0
    %91 = vmatpush2.xpose.msra.mxu0 0.0
    %92 = vmatprep.subr.mxu0 0.0
    %93 = vmatpush2.xpose.msra.mxu0 0.0
    %94 = vmatprep.subr.mxu0 0.0
    %95 = vmatpush2.xpose.msra.mxu0 0.0
    %96 = vmatprep.subr.mxu0 0.0
    %97 = vmatpush2.xpose.msra.mxu0 0.0
    %98 = vmatprep.subr.mxu0 0.0
    %99 = vmatpush2.xpose.msra.mxu0 0.0
    %100 = vmatprep.subr.mxu0 0.0
    %101 = vmatpush2.xpose.msra.mxu0 0.0
    %102 = vmatprep.subr.mxu0 0.0
    %103 = vmatpush2.xpose.msra.mxu0 0.0
    %104 = vmatprep.subr.mxu0 0.0
    %105 = vmatpush2.xpose.msra.mxu0 0.0
    %106 = vmatprep.subr.mxu0 0.0
    %107 = vmatpush2.xpose.msra.mxu0 0.0
    %108 = vmatprep.subr.mxu0 0.0
    %109 = vmatpush2.xpose.msra.mxu0 0.0
    %110 = vmatprep.subr.mxu0 0.0
    %111 = vmatpush2.xpose.msra.mxu0 0.0
    %112 = vmatprep.subr.mxu0 0.0
    %113 = vmatpush2.xpose.msra.mxu0 0.0
    %114 = vmatprep.subr.mxu0 0.0
    %115 = vmatpush2.xpose.msra.mxu0 0.0
    %116 = vmatprep.subr.mxu0 0.0
    %117 = vmatpush2.xpose.msra.mxu0 0.0
    %118 = vmatprep.mubr.f32.mxu0 0.0
    %119 = vmatmul.mubr.f32.gmra.mxu0 %v49
    %v120 = vpop.f32.mrf.mxu0
    %v121 = vadd.f32 %v45, %v120
    %v122 = vpop.f32.mrf.mxu0
    %123 = vdwg.mxu0
    %vm124 = vcmask 57344
    %v125 = vsel %vm124, %v121, -inf
    %126 = vmax.xlane.f32.xlu0 %v125
    %v127 = vpop.xlane.xlu0 %126
    %v128 = vsub.f32 %v121, %v127
    %v129 = vmul.f32 %v128, 1.442695
    %v130 = vpow.pop %v129
    %v131 = vsel %vm124, %v130, 0.0
    %132 = vadd.xlane.f32.xlu0 %v131
    %v133 = vpop.xlane.xlu0 %132
    %v134 = vrcp.pop %v133
    %v135 = vmul.f32 %v130, %v134
    %v136 = vlaneseq
    %v137 = vand.u32 %v136, 127
    %v138 = vstv %s28
    %vm139 = vcmp.eq.s32.totalorder %v137, %v138
    %v140 = vsel %vm139, %v121, 0.0
    %v141 = vsel %vm124, %v140, 0.0
    %142 = vadd.xlane.f32.xlu0 %v141
    %v143 = vpop.xlane.xlu0 %142
    %v144 = vsub.f32 %v143, %v127
    %v145 = vlog2.pop %v133
    %v146 = vmul.f32 %v145, 0.6931472
    %v147 = vsub.f32 %v144, %v146
    %149 = vrot.lane.b32.xlu0 %v32, 16
    %v150 = vpop.permute.xlu0 %149
    %v153 = vrot.slane %v30, 1
    %154 = vrot.lane.b32.xlu0 %v153, 32
    %v155 = vpop.permute.xlu0 %154
    %v157 = vsel %vm47, %v30, %v150
    %vm158 = vcmask 261120
    %v159 = vsel %vm158, %v157, %v155
    %v160 = vld [vmem:[%s2] sm:$0xff]
    %v161 = vld [vmem:[%s2 + $0x8] sm:$0xff]
    %v162 = vld [vmem:[%s2 + $0x10] sm:$0xff]
    %v163 = vld [vmem:[%s2 + $0x18] sm:$0xff]
    %v164 = vld [vmem:[%s2 + $0x20] sm:$0xff]
    %v165 = vld [vmem:[%s2 + $0x28] sm:$0xff]
    %v166 = vld [vmem:[%s2 + $0x30] sm:$0xff]
    %v167 = vld [vmem:[%s2 + $0x38] sm:$0xff]
    %v168 = vld [vmem:[%s2 + $0x80] sm:$0x1]
    %vm169 = vcmask 523264
    %v171 = vsel %vm169, %v159, 0
    %173 = vmatprep.subr.mxu0 0.0
    %174 = vmatpush1.msra.mxu0 0.0
    %175 = vmatprep.subr.mxu0 0.0
    %176 = vmatpush1.msra.mxu0 0.0
    %177 = vmatprep.subr.mxu0 0.0
    %178 = vmatpush1.msra.mxu0 0.0
    %179 = vmatprep.subr.mxu0 0.0
    %180 = vmatpush1.msra.mxu0 0.0
    %181 = vmatprep.subr.mxu0 0.0
    %182 = vmatpush1.msra.mxu0 0.0
    %183 = vmatprep.subr.mxu0 0.0
    %184 = vmatpush1.msra.mxu0 0.0
    %185 = vmatprep.subr.mxu0 0.0
    %186 = vmatpush1.msra.mxu0 0.0
    %187 = vmatprep.subr.mxu0 0.0
    %188 = vmatpush1.msra.mxu0 0.0
    %189 = vmatprep.subr.mxu0 0.0
    %190 = vmatpush1.msra.mxu0 %v167
    %191 = vmatprep.subr.mxu0 0.0
    %192 = vmatpush1.msra.mxu0 %v166
    %193 = vmatprep.subr.mxu0 0.0
    %194 = vmatpush1.msra.mxu0 %v165
    %195 = vmatprep.subr.mxu0 0.0
    %196 = vmatpush1.msra.mxu0 %v164
    %197 = vmatprep.subr.mxu0 0.0
    %198 = vmatpush1.msra.mxu0 %v163
    %199 = vmatprep.subr.mxu0 0.0
    %200 = vmatpush1.msra.mxu0 %v162
    %201 = vmatprep.subr.mxu0 0.0
    %202 = vmatpush1.msra.mxu0 %v161
    %203 = vmatprep.subr.mxu0 0.0
    %204 = vmatpush1.msra.mxu0 %v160
    %205 = vmatprep.subr.mxu0 0.0
    %206 = vmatpush2.msra.mxu0 0.0
    %207 = vmatprep.subr.mxu0 0.0
    %208 = vmatpush2.msra.mxu0 0.0
    %209 = vmatprep.subr.mxu0 0.0
    %210 = vmatpush2.msra.mxu0 0.0
    %211 = vmatprep.subr.mxu0 0.0
    %212 = vmatpush2.msra.mxu0 0.0
    %213 = vmatprep.subr.mxu0 0.0
    %214 = vmatpush2.msra.mxu0 0.0
    %215 = vmatprep.subr.mxu0 0.0
    %216 = vmatpush2.msra.mxu0 0.0
    %217 = vmatprep.subr.mxu0 0.0
    %218 = vmatpush2.msra.mxu0 0.0
    %219 = vmatprep.subr.mxu0 0.0
    %220 = vmatpush2.msra.mxu0 0.0
    %221 = vmatprep.subr.mxu0 0.0
    %222 = vmatpush2.msra.mxu0 0.0
    %223 = vmatprep.subr.mxu0 0.0
    %224 = vmatpush2.msra.mxu0 0.0
    %225 = vmatprep.subr.mxu0 0.0
    %226 = vmatpush2.msra.mxu0 0.0
    %227 = vmatprep.subr.mxu0 0.0
    %228 = vmatpush2.msra.mxu0 0.0
    %229 = vmatprep.subr.mxu0 0.0
    %230 = vmatpush2.msra.mxu0 0.0
    %231 = vmatprep.subr.mxu0 0.0
    %232 = vmatpush2.msra.mxu0 0.0
    %233 = vmatprep.subr.mxu0 0.0
    %234 = vmatpush2.msra.mxu0 0.0
    %235 = vmatprep.subr.mxu0 0.0
    %236 = vmatpush2.msra.mxu0 0.0
    %237 = vmatprep.mubr.f32.mxu0 0.0
    %238 = vmatmul.mubr.f32.gmra.mxu0 %v171
    %v239 = vpop.f32.mrf.mxu0
    %v240 = vadd.f32 %v168, %v239
    %v241 = vpop.f32.mrf.mxu0
    %242 = vdwg.mxu0
    %v243 = vxor.u32 %v240, 2147483648
    %v244 = vmul.f32 %v243, 1.442695
    %v245 = vpow.pop %v244
    %v246 = vadd.f32 %v245, 1.0
    %v247 = vrcp.pop %v246
    %v248 = vmul.f32 1.0, %v247
    %v249 = vld [vmem:[%s2 + $0x40] sm:$0xff]
    %v250 = vld [vmem:[%s2 + $0x48] sm:$0xff]
    %v251 = vld [vmem:[%s2 + $0x50] sm:$0xff]
    %v252 = vld [vmem:[%s2 + $0x58] sm:$0xff]
    %v253 = vld [vmem:[%s2 + $0x60] sm:$0xff]
    %v254 = vld [vmem:[%s2 + $0x68] sm:$0xff]
    %v255 = vld [vmem:[%s2 + $0x70] sm:$0xff]
    %v256 = vld [vmem:[%s2 + $0x78] sm:$0xff]
    %v257 = vld [vmem:[%s2 + $0x81] sm:$0x1]
    %v259 = vsel %vm169, %v248, 0
    %261 = vmatprep.subr.mxu0 0.0
    %262 = vmatpush1.msra.mxu0 0.0
    %263 = vmatprep.subr.mxu0 0.0
    %264 = vmatpush1.msra.mxu0 0.0
    %265 = vmatprep.subr.mxu0 0.0
    %266 = vmatpush1.msra.mxu0 0.0
    %267 = vmatprep.subr.mxu0 0.0
    %268 = vmatpush1.msra.mxu0 0.0
    %269 = vmatprep.subr.mxu0 0.0
    %270 = vmatpush1.msra.mxu0 0.0
    %271 = vmatprep.subr.mxu0 0.0
    %272 = vmatpush1.msra.mxu0 0.0
    %273 = vmatprep.subr.mxu0 0.0
    %274 = vmatpush1.msra.mxu0 0.0
    %275 = vmatprep.subr.mxu0 0.0
    %276 = vmatpush1.msra.mxu0 0.0
    %277 = vmatprep.subr.mxu0 0.0
    %278 = vmatpush1.msra.mxu0 %v256
    %279 = vmatprep.subr.mxu0 0.0
    %280 = vmatpush1.msra.mxu0 %v255
    %281 = vmatprep.subr.mxu0 0.0
    %282 = vmatpush1.msra.mxu0 %v254
    %283 = vmatprep.subr.mxu0 0.0
    %284 = vmatpush1.msra.mxu0 %v253
    %285 = vmatprep.subr.mxu0 0.0
    %286 = vmatpush1.msra.mxu0 %v252
    %287 = vmatprep.subr.mxu0 0.0
    %288 = vmatpush1.msra.mxu0 %v251
    %289 = vmatprep.subr.mxu0 0.0
    %290 = vmatpush1.msra.mxu0 %v250
    %291 = vmatprep.subr.mxu0 0.0
    %292 = vmatpush1.msra.mxu0 %v249
    %293 = vmatprep.subr.mxu0 0.0
    %294 = vmatpush2.msra.mxu0 0.0
    %295 = vmatprep.subr.mxu0 0.0
    %296 = vmatpush2.msra.mxu0 0.0
    %297 = vmatprep.subr.mxu0 0.0
    %298 = vmatpush2.msra.mxu0 0.0
    %299 = vmatprep.subr.mxu0 0.0
    %300 = vmatpush2.msra.mxu0 0.0
    %301 = vmatprep.subr.mxu0 0.0
    %302 = vmatpush2.msra.mxu0 0.0
    %303 = vmatprep.subr.mxu0 0.0
    %304 = vmatpush2.msra.mxu0 0.0
    %305 = vmatprep.subr.mxu0 0.0
    %306 = vmatpush2.msra.mxu0 0.0
    %307 = vmatprep.subr.mxu0 0.0
    %308 = vmatpush2.msra.mxu0 0.0
    %309 = vmatprep.subr.mxu0 0.0
    %310 = vmatpush2.msra.mxu0 0.0
    %311 = vmatprep.subr.mxu0 0.0
    %312 = vmatpush2.msra.mxu0 0.0
    %313 = vmatprep.subr.mxu0 0.0
    %314 = vmatpush2.msra.mxu0 0.0
    %315 = vmatprep.subr.mxu0 0.0
    %316 = vmatpush2.msra.mxu0 0.0
    %317 = vmatprep.subr.mxu0 0.0
    %318 = vmatpush2.msra.mxu0 0.0
    %319 = vmatprep.subr.mxu0 0.0
    %320 = vmatpush2.msra.mxu0 0.0
    %321 = vmatprep.subr.mxu0 0.0
    %322 = vmatpush2.msra.mxu0 0.0
    %323 = vmatprep.subr.mxu0 0.0
    %324 = vmatpush2.msra.mxu0 0.0
    %325 = vmatprep.mubr.f32.mxu0 0.0
    %326 = vmatmul.mubr.f32.gmra.mxu0 %v259
    %v327 = vpop.f32.mrf.mxu0
    %v328 = vadd.f32 %v257, %v327
    %v329 = vpop.f32.mrf.mxu0
    %330 = vdwg.mxu0
    %vm331 = vcmp.ge.s32.totalorder %v137, 0
    %vm332 = vcmp.lt.s32.totalorder %v137, 9
    %vm333 = vmand %vm331, %vm332
    %v334 = vsel %vm333, %v328, -inf
    %vm335 = vcmask 516096
    %v336 = vsel %vm335, %v334, -inf
    %337 = vmax.xlane.f32.xlu0 %v336
    %v338 = vpop.xlane.xlu0 %337
    %v339 = vsub.f32 %v328, %v338
    %v340 = vsel %vm333, %v339, -1e+30
    %v341 = vmul.f32 %v340, 1.442695
    %v342 = vpow.pop %v341
    %v343 = vsel %vm335, %v342, 0.0
    %344 = vadd.xlane.f32.xlu0 %v343
    %v345 = vpop.xlane.xlu0 %344
    %vm346 = vcmp.eq.f32.partialorder %v328, %v338
    %vm347 = vmand %vm333, %vm346
    %v348 = vsel %vm347, %v137, 9
    %v349 = vsel %vm335, %v348, 2147483647
    %v350 = vand.u32 %v349, 65535
    %v351 = vshra.s32 %v349, 16
    %v352 = vcvt.s32.f32 %v350
    %v353 = vcvt.s32.f32 %v351
    %354 = vmin.xlane.f32.xlu0 %v353
    %v355 = vpop.xlane.xlu0 %354
    %vm356 = vcmp.eq.f32.partialorder %v353, %v355
    %v357 = vsel %vm356, %v352, inf
    %358 = vmin.xlane.f32.xlu0 %v357
    %v359 = vpop.xlane.xlu0 %358
    %v360 = vcvt.f32.s32 %v359
    %v361 = vcvt.f32.s32 %v355
    %v362 = vshll.u32 %v361, 16
    %v363 = vadd.s32 %v362, %v360
    %s364 = sld [smem:[#allocation2 + $0x1]]
    %v365 = vstv %s364
    %vm366 = vcmp.eq.s32.totalorder %v137, %v365
    %v367 = vsel %vm366, %v328, 0.0
    %v368 = vsel %vm335, %v367, 0.0
    %369 = vadd.xlane.f32.xlu0 %v368
    %v370 = vpop.xlane.xlu0 %369
    %v371 = vsub.f32 %v370, %v338
    %v372 = vadd.f32 %v371, 0.0
    %v373 = vlog2.pop %v345
    %v374 = vmul.f32 %v373, 0.6931472
    %v375 = vsub.f32 %v372, %v374
    %vm376 = vcmp.ge.s32.totalorder %v137, 9
    %vm377 = vcmp.lt.s32.totalorder %v137, 18
    %vm378 = vmand %vm376, %vm377
    %v379 = vsel %vm378, %v328, -inf
    %v380 = vsel %vm335, %v379, -inf
    %381 = vmax.xlane.f32.xlu0 %v380
    %v382 = vpop.xlane.xlu0 %381
    %v383 = vsub.f32 %v328, %v382
    %v384 = vsel %vm378, %v383, -1e+30
    %v385 = vmul.f32 %v384, 1.442695
    %v386 = vpow.pop %v385
    %v387 = vsel %vm335, %v386, 0.0
    %388 = vadd.xlane.f32.xlu0 %v387
    %v389 = vpop.xlane.xlu0 %388
    %vm390 = vcmp.eq.f32.partialorder %v328, %v382
    %vm391 = vmand %vm378, %vm390
    %v392 = vsub.s32 %v137, 9
    %v393 = vsel %vm391, %v392, 9
    %v394 = vsel %vm335, %v393, 2147483647
    %v395 = vand.u32 %v394, 65535
    %v396 = vshra.s32 %v394, 16
    %v397 = vcvt.s32.f32 %v395
    %v398 = vcvt.s32.f32 %v396
    %399 = vmin.xlane.f32.xlu0 %v398
    %v400 = vpop.xlane.xlu0 %399
    %vm401 = vcmp.eq.f32.partialorder %v398, %v400
    %v402 = vsel %vm401, %v397, inf
    %403 = vmin.xlane.f32.xlu0 %v402
    %v404 = vpop.xlane.xlu0 %403
    %v405 = vcvt.f32.s32 %v404
    %v406 = vcvt.f32.s32 %v400
    %v407 = vshll.u32 %v406, 16
    %v408 = vadd.s32 %v407, %v405
    %s409 = sld [smem:[#allocation2 + $0x2]]
    %s410 = sadd.s32 %s409, 9
    %v411 = vstv %s410
    %vm412 = vcmp.eq.s32.totalorder %v137, %v411
    %v413 = vsel %vm412, %v328, 0.0
    %v414 = vsel %vm335, %v413, 0.0
    %415 = vadd.xlane.f32.xlu0 %v414
    %v416 = vpop.xlane.xlu0 %415
    %v417 = vsub.f32 %v416, %v382
    %v418 = vadd.f32 %v375, %v417
    %v419 = vlog2.pop %v389
    %v420 = vmul.f32 %v419, 0.6931472
    %v421 = vsub.f32 %v418, %v420
    %vm422 = vcmask 7168
    %v423 = vsel %vm422, %v363, %v408
    %vm424 = vcmp.eq.s32.totalorder %v137, 1
    %v425 = vadd.s32 %v423, 4
    %vm426 = vcmp.lt.s32.totalorder %v425, 0
    %v427 = vsub.s32 0, %v425
    %v428 = vsel %vm426, %v427, %v425
    %v429 = vshrl.u32 %v428, 3
    %v430 = vand.u32 %v428, 7
    %v431 = vsub.s32 0, %v430
    %v432 = vsel %vm426, %v431, %v430
    %vm433 = vcmp.ne.s32.totalorder %v432, 0
    %vm434 = vcmp.lt.s32.totalorder %v432, 0
    %vm435 = vmand %vm434, %vm433
    %v436 = vadd.s32 %v432, 8
    %v437 = vsel %vm435, %v436, %v432
    %v438 = vsel %vm424, %v437, %v423
    %v439 = vcvt.s32.f32 %v423
    %v440 = vcvt.s32.f32 %v438
    %442 = vrot.lane.b32.xlu0 %v328, 10
    %v443 = vpop.permute.xlu0 %442
    %446 = vrot.lane.b32.xlu0 %v439, 28
    %v447 = vpop.permute.xlu0 %446
    %450 = vrot.lane.b32.xlu0 %v440, 30
    %v451 = vpop.permute.xlu0 %450
    %vm453 = vcmask 64512
    %v454 = vsel %vm453, %v135, %v147
    %vm455 = vcmask 72704
    %v456 = vsel %vm455, %v454, %v421
    %vm457 = vcmask 80896
    %v458 = vsel %vm457, %v456, %v443
    %vm459 = vcmask 228352
    %v460 = vsel %vm459, %v458, %v447
    %vm461 = vcmask 244736
    %v462 = vsel %vm461, %v460, %v451
    %v463 = vsel %vm158, %v462, 0.0
    %464 = vst [vmem:[#allocation5] sm:$0x1] %v463
    // Predicated region
    $region18: #{tpu_custom_call.1} parent=1 // pred_check
      _
    $region19: #{tpu_custom_call.1} parent=1 // pred_check_branch
      %466 = sbr.rel (0) target = $region21
    $region20: #{tpu_custom_call.1} parent=1 // pred_region
      %s468 = ssub.s32 16, 16
      %469 = vsyncadd [#allocation3], %s468
      %s471 = sshll.u32 [#allocation5], 4
      %s472 = int_to_ptr.vmem [resolvable:$true] %s471
      %474 = dma.vmem_to_hbm [thread:$0]  %s472, 16, %s3, [#allocation3]
    $region21: #{tpu_custom_call.1} parent=1 // pred_fallthru
      _
    // Predicated region
    $region22: #{tpu_custom_call.1} parent=1 // pred_check
      _
    $region23: #{tpu_custom_call.1} parent=1 // pred_check_branch
      %476 = sbr.rel (0) target = $region25
    $region24: #{tpu_custom_call.1} parent=1 // pred_region
      %477 = dma.done [#allocation3], 16
    $region25: #{tpu_custom_call.1} parent=1 // pred_fallthru
      _
    %478 = vsyncpa [#allocation3], 1
    %479 = vsyncpa [#allocation4], 1

</llo_original>
